<compile_context>
chip_gen: v5e
topology: v5e:2x2
jax: 0.10.0
libtpu: 0.0.40
codegen_flags: <defaults>
</compile_context>

<pallas_src>
import functools

import jax
import jax.numpy as jnp
from jax.experimental import pallas as pl
from jax.experimental.pallas import tpu as pltpu

_LANES = 128
_SUBLANES = 8


def _round_up(x, m):
    return (x + m - 1) // m * m


def _mlp_fused_kernel(x_ref, *refs, n_hidden, compute_dtype):
    """Forward pass of the whole MLP for one batch tile.

    refs = (w0, b0, w1, b1, ..., w_last, b_last, o_ref)
      x_ref:  (TB, D_in)         compute_dtype (bf16), streamed per grid step
      w_l:    (D_in_l, D_out_l)  compute_dtype, BN scale already folded in
      b_l:    (1, D_out_l)       f32, BN shift already folded in
      w_last: (1, D_last)        compute_dtype (final Dout=1 projection, as a row)
      b_last: (1, 1)             f32
      o_ref:  (TB, 1)            f32 narrow output block (4 B/row HBM writeback)
    """
    o_ref = refs[-1]
    p = refs[:-1]

    h = x_ref[...]                                  # bf16, fed straight to the MXU
    for l in range(n_hidden):
        w = p[2 * l][...]                           # compute_dtype (bf16)
        b = p[2 * l + 1][...]                       # f32
        # bf16 x bf16 MXU matmul with f32 accumulation; epilogue stays in f32.
        h = jnp.dot(h.astype(compute_dtype), w, preferred_element_type=jnp.float32)
        h = jnp.maximum(h + b, 0.0)                 # folded BN bias + ReLU (f32)

    # Final Linear(D_last, 1): VPU multiply + cross-lane (XLU) reduction instead of
    # a lane-width-1 MXU matmul.
    w_last = p[2 * n_hidden][...].astype(jnp.float32)        # (1, D_last)
    b_last = p[2 * n_hidden + 1][...]                        # (1, 1)
    y = jnp.sum(h * w_last, axis=-1, keepdims=True) + b_last  # (TB, 1) f32
    o_ref[...] = y.astype(o_ref.dtype)


def mlp_forward(params, x, *, batch_tile=1024):
    """x: (B, input_dim) f32. Returns (B, 1) f32 (eval-mode MLP forward)."""
    B, d_in = x.shape
    n_hidden = params["n_hidden"]
    ws, bs = params["ws"], params["bs"]
    w_last, b_last = params["w_last"], params["b_last"]
    compute_dtype = params["compute_dtype"]
    d_pad = params["input_dim_padded"]
    assert d_in == params["input_dim"]

    itemsize_c = jnp.dtype(compute_dtype).itemsize
    # bf16 packs two rows per sublane -> 16-row alignment avoids repacking shuffles.
    tb_align = 16 if itemsize_c == 2 else _SUBLANES

    if B <= batch_tile:
        tb = _round_up(max(B, 1), tb_align)
        b_pad = tb
    else:
        tb = _round_up(batch_tile, tb_align)
        b_pad = _round_up(B, tb)
    grid = (b_pad // tb,)

    # Pad batch rows (zeros, sliced off below) and feature columns (exact: matching
    # padded weight rows are zero), and stream x in the compute dtype (bf16).
    x = jnp.pad(x, ((0, b_pad - B), (0, d_pad - d_in))).astype(compute_dtype)

    # Activations indexed by the batch-grid index; weights/biases constant index
    # maps + single buffering -> VMEM-resident once, never re-DMA'd.
    # (On v5e, if the x DMA is exposed, raise this spec to pipeline_mode=pl.Buffered(3).)
    in_specs = [pl.BlockSpec((tb, d_pad), lambda i: (i, 0))]
    operands = [x]
    resident = []
    for w, b in zip(ws, bs):
        resident.extend([w, b])
    resident.extend([w_last, b_last])
    for arr in resident:
        in_specs.append(
            pl.BlockSpec(arr.shape, lambda i: (0, 0), pipeline_mode=pl.Buffered(1))
        )
        operands.append(arr)

    out_specs = pl.BlockSpec((tb, 1), lambda i: (i, 0))
    out_shape = jax.ShapeDtypeStruct((b_pad, 1), jnp.float32)

    # ---- VMEM budget (scoped limit) -------------------------------------------
    def _vmem_footprint(a):
        # (8,128)-padded VMEM footprint of a resident operand (approximate).
        rows = _round_up(a.shape[0], _SUBLANES) if a.ndim >= 2 else _SUBLANES
        cols = _round_up(a.shape[-1], _LANES)
        return rows * cols * a.dtype.itemsize

    param_vmem = sum(_vmem_footprint(a) for a in resident)     # single-buffered
    x_vmem = 2 * tb * d_pad * itemsize_c                       # double-buffered x tiles
    out_vmem = 2 * tb * _LANES * 4                             # (tb,1) padded to 128 lanes
    max_dim = max([d_pad] + [w.shape[1] for w in ws] + [w_last.shape[1]])
    act_vmem = 2 * tb * max_dim * (4 + itemsize_c)             # f32 h + bf16 copy, 2x slack
    vmem_limit = int(
        min(max(param_vmem + x_vmem + out_vmem + act_vmem + (4 << 20), 32 << 20),
            100 << 20)
    )

    # ---- scheduler hint ---------------------------------------------------------
    flops = sum(2 * b_pad * w.shape[0] * w.shape[1] for w in ws)
    flops += 2 * b_pad * w_last.shape[1]
    bytes_accessed = int(
        sum(int(a.size) * a.dtype.itemsize for a in operands) + b_pad * 4
    )

    kernel = functools.partial(
        _mlp_fused_kernel, n_hidden=n_hidden, compute_dtype=compute_dtype
    )

    out = pl.pallas_call(
        kernel,
        out_shape=out_shape,
        grid=grid,
        in_specs=in_specs,
        out_specs=out_specs,
        compiler_params=pltpu.CompilerParams(
            dimension_semantics=("parallel",),
            vmem_limit_bytes=vmem_limit,
        ),
        cost_estimate=pl.CostEstimate(
            flops=int(flops), transcendentals=0, bytes_accessed=bytes_accessed
        ),
    )(*operands)

    return out[:B]


def init_mlp_params(key, input_dim, hidden_dim, *, batch_norm=True, eps=1e-5,
                    compute_dtype=jnp.bfloat16, dim_align=128):
    """Synthetic parameters mirroring the PyTorch module, BN folded offline and all
    feature dims zero-padded to `dim_align` (use 256 on v6e/v7x). Padding is exact:
    padded output channels get zero weight and zero bias."""
    dims = [input_dim] + list(hidden_dim)
    dims_pad = [_round_up(d, dim_align) for d in dims]

    ws, bs = [], []
    for l, (in_dim, out_dim) in enumerate(zip(dims, dims[1:])):
        in_pad, out_pad = dims_pad[l], dims_pad[l + 1]
        key, kw, kb = jax.random.split(key, 3)
        # nn.Linear default init: U(-1/sqrt(in_dim), 1/sqrt(in_dim))
        bound = 1.0 / float(in_dim) ** 0.5
        w = jax.random.uniform(kw, (out_dim, in_dim), jnp.float32, -bound, bound)
        b = jax.random.uniform(kb, (out_dim,), jnp.float32, -bound, bound)
        if batch_norm:
            gamma = jnp.ones((out_dim,), jnp.float32)
            beta = jnp.zeros((out_dim,), jnp.float32)
            r_mean = jnp.zeros((out_dim,), jnp.float32)
            r_var = jnp.ones((out_dim,), jnp.float32)
            scale = gamma / jnp.sqrt(r_var + eps)
            shift = beta - r_mean * scale
        else:
            scale = jnp.ones((out_dim,), jnp.float32)
            shift = jnp.zeros((out_dim,), jnp.float32)
        # Fold BN: (x @ W^T + b) * scale + shift == x @ (W^T * scale) + (b*scale + shift)
        w_folded = w.T * scale[None, :]                           # (in, out)
        b_folded = b * scale + shift                              # (out,)
        # Zero-pad to lane-aligned dims.
        w_folded = jnp.pad(w_folded, ((0, in_pad - in_dim), (0, out_pad - out_dim)))
        b_folded = jnp.pad(b_folded, ((0, out_pad - out_dim),))
        ws.append(w_folded.astype(compute_dtype))
        bs.append(b_folded.reshape(1, out_pad).astype(jnp.float32))

    # Final Linear(dims[-1], 1) — stored as a row vector for the in-kernel reduction.
    key, kw, kb = jax.random.split(key, 3)
    in_dim, in_pad = dims[-1], dims_pad[-1]
    bound = 1.0 / float(in_dim) ** 0.5
    w = jax.random.uniform(kw, (1, in_dim), jnp.float32, -bound, bound)
    b = jax.random.uniform(kb, (1,), jnp.float32, -bound, bound)
    w = jnp.pad(w, ((0, 0), (0, in_pad - in_dim)))
    return {
        "n_hidden": len(dims) - 1,
        "input_dim": input_dim,
        "input_dim_padded": dims_pad[0],
        "ws": ws,
        "bs": bs,
        "w_last": w.astype(compute_dtype),                        # (1, in_pad)
        "b_last": b.reshape(1, 1).astype(jnp.float32),            # (1, 1)
        "compute_dtype": compute_dtype,
    }


def mlp_reference(params, x):
    """Pure-JAX reference of the same eval-mode math (same dtypes as the kernel)."""
    d_pad = params["input_dim_padded"]
    B, d_in = x.shape
    compute_dtype = params["compute_dtype"]
    h = jnp.pad(x, ((0, 0), (0, d_pad - d_in))).astype(compute_dtype)
    for w, b in zip(params["ws"], params["bs"]):
        h = jnp.dot(h.astype(w.dtype), w, preferred_element_type=jnp.float32) + b
        h = jnp.maximum(h, 0.0)
    w_last = params["w_last"].astype(jnp.float32)
    return jnp.sum(h * w_last, axis=-1, keepdims=True) + params["b_last"]


if __name__ == "__main__":
    key = jax.random.PRNGKey(0)
    k_x, k_p = jax.random.split(key)

    batch = 8
    input_dim = 16
    hidden_dim = [32, 32]

    x = jax.random.normal(k_x, (batch, input_dim), jnp.float32)
    params = init_mlp_params(k_p, input_dim, hidden_dim, batch_norm=True)

    out = mlp_forward(params, x)
    out = jax.block_until_ready(out)
    assert out.shape == (batch, 1), out.shape

    ref = jax.block_until_ready(mlp_reference(params, x))
    assert jnp.allclose(out, ref, atol=1e-4, rtol=1e-4), (
        float(jnp.max(jnp.abs(out - ref)))
    )

    print("KERNEL_OK")
</pallas_src>

<mosaic_0001>
module attributes {stable_mosaic.version = 11 : i64} {
  func.func @_mlp_fused_kernel(%arg0: i32, %arg1: memref<16x128xbf16, #tpu.memory_space<vmem>>, %arg2: memref<128x128xbf16, #tpu.memory_space<vmem>>, %arg3: memref<1x128xf32, #tpu.memory_space<vmem>>, %arg4: memref<128x128xbf16, #tpu.memory_space<vmem>>, %arg5: memref<1x128xf32, #tpu.memory_space<vmem>>, %arg6: memref<1x128xbf16, #tpu.memory_space<vmem>>, %arg7: memref<1x1xf32, #tpu.memory_space<vmem>>, %arg8: memref<16x1xf32, #tpu.memory_space<vmem>>) attributes {dimension_semantics = [#tpu.dimension_semantics<parallel>], iteration_bounds = array<i64: 1>, scalar_prefetch = 0 : i64, scratch_operands = 0 : i64, tpu.core_type = #tpu.core_type<tc>, window_params = [{transform_indices = @transform_0, window_bounds = array<i64: 16, 128>}, {pipeline_mode = #tpu.pipeline_mode<synchronous>, transform_indices = @transform_1, window_bounds = array<i64: 128, 128>}, {pipeline_mode = #tpu.pipeline_mode<synchronous>, transform_indices = @transform_2, window_bounds = array<i64: 1, 128>}, {pipeline_mode = #tpu.pipeline_mode<synchronous>, transform_indices = @transform_3, window_bounds = array<i64: 128, 128>}, {pipeline_mode = #tpu.pipeline_mode<synchronous>, transform_indices = @transform_4, window_bounds = array<i64: 1, 128>}, {pipeline_mode = #tpu.pipeline_mode<synchronous>, transform_indices = @transform_5, window_bounds = array<i64: 1, 128>}, {pipeline_mode = #tpu.pipeline_mode<synchronous>, transform_indices = @transform_6, window_bounds = array<i64: 1, 1>}, {transform_indices = @transform_7, window_bounds = array<i64: 16, 1>}]} {
    %c0 = arith.constant 0 : index
    %c0_0 = arith.constant 0 : index
    %0 = vector.load %arg1[%c0, %c0_0] : memref<16x128xbf16, #tpu.memory_space<vmem>>, vector<16x128xbf16>
    %c0_1 = arith.constant 0 : index
    %c0_2 = arith.constant 0 : index
    %1 = vector.load %arg2[%c0_1, %c0_2] : memref<128x128xbf16, #tpu.memory_space<vmem>>, vector<128x128xbf16>
    %c0_3 = arith.constant 0 : index
    %c0_4 = arith.constant 0 : index
    %2 = vector.load %arg3[%c0_3, %c0_4] : memref<1x128xf32, #tpu.memory_space<vmem>>, vector<1x128xf32>
    %cst = arith.constant dense<0.000000e+00> : vector<16x128xf32>
    %3 = tpu.matmul %0, %1, %cst {dimension_numbers = #tpu.dot_dimension_numbers<[1], [0], [0], [1], [0, 0, 1, 1], [], []>} : vector<16x128xbf16>, vector<128x128xbf16>, vector<16x128xf32> -> vector<16x128xf32>
    %4 = vector.broadcast %2 : vector<1x128xf32> to vector<16x128xf32>
    %5 = arith.addf %3, %4 : vector<16x128xf32>
    %cst_5 = arith.constant 0.000000e+00 : f32
    %6 = vector.broadcast %cst_5 : f32 to vector<16x128xf32>
    %7 = arith.maximumf %5, %6 : vector<16x128xf32>
    %c0_6 = arith.constant 0 : index
    %c0_7 = arith.constant 0 : index
    %8 = vector.load %arg4[%c0_6, %c0_7] : memref<128x128xbf16, #tpu.memory_space<vmem>>, vector<128x128xbf16>
    %c0_8 = arith.constant 0 : index
    %c0_9 = arith.constant 0 : index
    %9 = vector.load %arg5[%c0_8, %c0_9] : memref<1x128xf32, #tpu.memory_space<vmem>>, vector<1x128xf32>
    %10 = arith.truncf %7 : vector<16x128xf32> to vector<16x128xbf16>
    %cst_10 = arith.constant dense<0.000000e+00> : vector<16x128xf32>
    %11 = tpu.matmul %10, %8, %cst_10 {dimension_numbers = #tpu.dot_dimension_numbers<[1], [0], [0], [1], [0, 0, 1, 1], [], []>} : vector<16x128xbf16>, vector<128x128xbf16>, vector<16x128xf32> -> vector<16x128xf32>
    %12 = vector.broadcast %9 : vector<1x128xf32> to vector<16x128xf32>
    %13 = arith.addf %11, %12 : vector<16x128xf32>
    %cst_11 = arith.constant 0.000000e+00 : f32
    %14 = vector.broadcast %cst_11 : f32 to vector<16x128xf32>
    %15 = arith.maximumf %13, %14 : vector<16x128xf32>
    %c0_12 = arith.constant 0 : index
    %c0_13 = arith.constant 0 : index
    %16 = vector.load %arg6[%c0_12, %c0_13] : memref<1x128xbf16, #tpu.memory_space<vmem>>, vector<1x128xbf16>
    %17 = arith.extf %16 : vector<1x128xbf16> to vector<1x128xf32>
    %c0_14 = arith.constant 0 : index
    %c0_15 = arith.constant 0 : index
    %18 = vector.load %arg7[%c0_14, %c0_15] : memref<1x1xf32, #tpu.memory_space<vmem>>, vector<1x1xf32>
    %19 = vector.broadcast %17 : vector<1x128xf32> to vector<16x128xf32>
    %20 = arith.mulf %15, %19 : vector<16x128xf32>
    %cst_16 = arith.constant dense<0.000000e+00> : vector<16xf32>
    %21 = vector.multi_reduction <add>, %20, %cst_16 [1] : vector<16x128xf32> to vector<16xf32>
    %22 = vector.shape_cast %21 : vector<16xf32> to vector<16x1xf32>
    %23 = vector.broadcast %18 : vector<1x1xf32> to vector<16x1xf32>
    %24 = arith.addf %22, %23 : vector<16x1xf32>
    %c0_17 = arith.constant 0 : index
    %c0_18 = arith.constant 0 : index
    %25 = vector.load %arg8[%c0_17, %c0_18] : memref<16x1xf32, #tpu.memory_space<vmem>>, vector<16x1xf32>
    tpu.vector_store %arg8[%c0_17, %c0_18], %24 {strides = array<i32>} : memref<16x1xf32, #tpu.memory_space<vmem>>, vector<16x1xf32>,
    return
  }
  func.func @transform_0(%arg0: i32) -> (i32, i32) {
    %c0_i32 = arith.constant 0 : i32
    %c0_i32_0 = arith.constant 0 : i32
    return %arg0, %c0_i32 : i32, i32
  }
  func.func @transform_1(%arg0: i32) -> (i32, i32) {
    %c0_i32 = arith.constant 0 : i32
    %c0_i32_0 = arith.constant 0 : i32
    %c0_i32_1 = arith.constant 0 : i32
    return %c0_i32, %c0_i32_0 : i32, i32
  }
  func.func @transform_2(%arg0: i32) -> (i32, i32) {
    %c0_i32 = arith.constant 0 : i32
    %c0_i32_0 = arith.constant 0 : i32
    %c0_i32_1 = arith.constant 0 : i32
    return %c0_i32, %c0_i32_0 : i32, i32
  }
  func.func @transform_3(%arg0: i32) -> (i32, i32) {
    %c0_i32 = arith.constant 0 : i32
    %c0_i32_0 = arith.constant 0 : i32
    %c0_i32_1 = arith.constant 0 : i32
    return %c0_i32, %c0_i32_0 : i32, i32
  }
  func.func @transform_4(%arg0: i32) -> (i32, i32) {
    %c0_i32 = arith.constant 0 : i32
    %c0_i32_0 = arith.constant 0 : i32
    %c0_i32_1 = arith.constant 0 : i32
    return %c0_i32, %c0_i32_0 : i32, i32
  }
  func.func @transform_5(%arg0: i32) -> (i32, i32) {
    %c0_i32 = arith.constant 0 : i32
    %c0_i32_0 = arith.constant 0 : i32
    %c0_i32_1 = arith.constant 0 : i32
    return %c0_i32, %c0_i32_0 : i32, i32
  }
  func.func @transform_6(%arg0: i32) -> (i32, i32) {
    %c0_i32 = arith.constant 0 : i32
    %c0_i32_0 = arith.constant 0 : i32
    %c0_i32_1 = arith.constant 0 : i32
    return %c0_i32, %c0_i32_0 : i32, i32
  }
  func.func @transform_7(%arg0: i32) -> (i32, i32) {
    %c0_i32 = arith.constant 0 : i32
    %c0_i32_0 = arith.constant 0 : i32
    return %arg0, %c0_i32 : i32, i32
  }
}

</mosaic_0001>

<llo_original>
// kernel: tpu_custom_call.1
$region0: #{tpu_custom_call.1}
  #allocation0 [shape = 'u32[]', space=smem, size = 0x4, offset = 0x4, fixed_abs, tag = 'smem constant byte address 0x4 - core index']
  #allocation1 [shape = 'u32[72,128]{1,0:T(1,128)}', space=vmem, size = 0x9000, scoped, tag = 'internal scratch']
  #allocation2 [shape = 'f32[1,1]{1,0:T(1,128)S(1)}', space=vmem, size = 0x200, scoped, tag = 'scoped memory for tpu_custom_call.1']
  %s0 = inlined_call_operand.hbm [shape: bf16[16,128], index: 0, kind: input, shape index: {}]
  %s1 = inlined_call_operand.hbm [shape: bf16[128,128], index: 1, kind: input, shape index: {}]
  %s2 = inlined_call_operand.vmem [shape: f32[1,128], index: 2, kind: input, shape index: {}]
  %s3 = inlined_call_operand.hbm [shape: bf16[128,128], index: 3, kind: input, shape index: {}]
  %s4 = inlined_call_operand.vmem [shape: f32[1,128], index: 4, kind: input, shape index: {}]
  %s5 = inlined_call_operand.vmem [shape: bf16[1,128], index: 5, kind: input, shape index: {}]
  %s6 = inlined_call_operand.<no memory space> [shape: f32[1,1], index: 6, kind: input, shape index: {}]
  %s7 = inlined_call_operand.vmem [shape: f32[16,1], index: 7, kind: output, shape index: {}]
  %s8 = sld [smem:[#allocation0]]
  $region50: #{tpu_custom_call.1} parent=0
    _
  %s10 = ssub.s32 1, %s8
  %s11 = scalar_select 0, %s10, %s8
  %v12 = vstv %s6
  %13 = vst [vmem:[#allocation2] sm:$0x1] %v12
  $region1: #{tpu_custom_call.1} parent=0
    #allocation3 [shape = 'u8[4096]{0}', space=vmem, size = 0x1000, scoped, tag = 'input window, operand 0, single buffered']
    #allocation4 [shape = 's32[1]{0}', space=sflag, size = 0x4, scoped, tag = 'scoped memory for tpu_custom_call.1']
    #allocation5 [shape = 'u8[32768]{0}', space=vmem, size = 0x8000, scoped, tag = 'input window, operand 1, single buffered']
    #allocation6 [shape = 's32[1]{0}', space=sflag, size = 0x4, scoped, tag = 'scoped memory for tpu_custom_call.1']
    #allocation7 [shape = 'u8[32768]{0}', space=vmem, size = 0x8000, scoped, tag = 'input window, operand 3, single buffered']
    %14 = vsyncpa [#allocation4], 0
    %15 = vsyncpa [#allocation6], 0
    // Predicated region
    $region2: #{tpu_custom_call.1} parent=1 // pred_check
      _
    $region3: #{tpu_custom_call.1} parent=1 // pred_check_branch
      %17 = sbr.rel (0) target = $region5
    $region4: #{tpu_custom_call.1} parent=1 // pred_region
      %19 = vsyncadd [#allocation4], 0
      %s20 = sshll.u32 %s0, 4
      %s21 = int_to_ptr.hbm [resolvable:$true] %s20
      %s22 = sshll.u32 [#allocation3], 4
      %s23 = int_to_ptr.vmem [resolvable:$true] %s22
      %28 = dma.hbm_to_vmem [thread:$0]  %s21, 128, %s23, [#allocation4], 64, 64, 4
    $region5: #{tpu_custom_call.1} parent=1 // pred_fallthru
      _
    // Predicated region
    $region6: #{tpu_custom_call.1} parent=1 // pred_check
      _
    $region7: #{tpu_custom_call.1} parent=1 // pred_check_branch
      %30 = sbr.rel (0) target = $region9
    $region8: #{tpu_custom_call.1} parent=1 // pred_region
      %32 = vsyncadd [#allocation6], 0
      %s33 = sshll.u32 %s1, 4
      %s34 = int_to_ptr.hbm [resolvable:$true] %s33
      %s35 = sshll.u32 [#allocation5], 4
      %s36 = int_to_ptr.vmem [resolvable:$true] %s35
      %41 = dma.hbm_to_vmem [thread:$0]  %s34, 1024, %s36, [#allocation6], 64, 64, 4
    $region9: #{tpu_custom_call.1} parent=1 // pred_fallthru
      _
    // Predicated region
    $region10: #{tpu_custom_call.1} parent=1 // pred_check
      _
    $region11: #{tpu_custom_call.1} parent=1 // pred_check_branch
      %43 = sbr.rel (0) target = $region13
    $region12: #{tpu_custom_call.1} parent=1 // pred_region
      _
    $region13: #{tpu_custom_call.1} parent=1 // pred_fallthru
      _
    // Predicated region
    $region14: #{tpu_custom_call.1} parent=1 // pred_check
      _
    $region15: #{tpu_custom_call.1} parent=1 // pred_check_branch
      %45 = sbr.rel (0) target = $region17
    $region16: #{tpu_custom_call.1} parent=1 // pred_region
      %47 = vsyncadd [#allocation6], 0
      %s48 = sshll.u32 %s3, 4
      %s49 = int_to_ptr.hbm [resolvable:$true] %s48
      %s50 = sshll.u32 [#allocation7], 4
      %s51 = int_to_ptr.vmem [resolvable:$true] %s50
      %56 = dma.hbm_to_vmem [thread:$0]  %s49, 1024, %s51, [#allocation6], 64, 64, 4
    $region17: #{tpu_custom_call.1} parent=1 // pred_fallthru
      _
    // Predicated region
    $region18: #{tpu_custom_call.1} parent=1 // pred_check
      _
    $region19: #{tpu_custom_call.1} parent=1 // pred_check_branch
      %58 = sbr.rel (0) target = $region21
    $region20: #{tpu_custom_call.1} parent=1 // pred_region
      _
    $region21: #{tpu_custom_call.1} parent=1 // pred_fallthru
      _
    // Predicated region
    $region22: #{tpu_custom_call.1} parent=1 // pred_check
      _
    $region23: #{tpu_custom_call.1} parent=1 // pred_check_branch
      %60 = sbr.rel (0) target = $region25
    $region24: #{tpu_custom_call.1} parent=1 // pred_region
      _
    $region25: #{tpu_custom_call.1} parent=1 // pred_fallthru
      _
    // Predicated region
    $region26: #{tpu_custom_call.1} parent=1 // pred_check
      _
    $region27: #{tpu_custom_call.1} parent=1 // pred_check_branch
      %62 = sbr.rel (0) target = $region29
    $region28: #{tpu_custom_call.1} parent=1 // pred_region
      _
    $region29: #{tpu_custom_call.1} parent=1 // pred_fallthru
      _
    // Predicated region
    $region30: #{tpu_custom_call.1} parent=1 // pred_check
      _
    $region31: #{tpu_custom_call.1} parent=1 // pred_check_branch
      %64 = sbr.rel (0) target = $region33
    $region32: #{tpu_custom_call.1} parent=1 // pred_region
      %66 = dma.done [#allocation4], 128
    $region33: #{tpu_custom_call.1} parent=1 // pred_fallthru
      _
    // Predicated region
    $region34: #{tpu_custom_call.1} parent=1 // pred_check
      _
    $region35: #{tpu_custom_call.1} parent=1 // pred_check_branch
      %68 = sbr.rel (0) target = $region37
    $region36: #{tpu_custom_call.1} parent=1 // pred_region
      %70 = dma.done [#allocation6], 1024
    $region37: #{tpu_custom_call.1} parent=1 // pred_fallthru
      _
    // Predicated region
    $region38: #{tpu_custom_call.1} parent=1 // pred_check
      _
    $region39: #{tpu_custom_call.1} parent=1 // pred_check_branch
      %72 = sbr.rel (0) target = $region41
    $region40: #{tpu_custom_call.1} parent=1 // pred_region
      %74 = dma.done [#allocation6], 1024
    $region41: #{tpu_custom_call.1} parent=1 // pred_fallthru
      _
    %v75 = vld [vmem:[#allocation3] sm:$0xf]
    %v76 = vld [vmem:[#allocation3 + $0x4] sm:$0xf]
    %v77 = vld [vmem:[#allocation5] sm:$0xf]
    %v78 = vld [vmem:[#allocation5 + $0x4] sm:$0xf]
    %v79 = vld [vmem:[#allocation5 + $0x8] sm:$0xf]
    %v80 = vld [vmem:[#allocation5 + $0xc] sm:$0xf]
    %v81 = vld [vmem:[#allocation5 + $0x10] sm:$0xf]
    %v82 = vld [vmem:[#allocation5 + $0x14] sm:$0xf]
    %v83 = vld [vmem:[#allocation5 + $0x18] sm:$0xf]
    %v84 = vld [vmem:[#allocation5 + $0x1c] sm:$0xf]
    %v85 = vld [vmem:[#allocation5 + $0x20] sm:$0xf]
    %v86 = vld [vmem:[#allocation5 + $0x24] sm:$0xf]
    %v87 = vld [vmem:[#allocation5 + $0x28] sm:$0xf]
    %v88 = vld [vmem:[#allocation5 + $0x2c] sm:$0xf]
    %v89 = vld [vmem:[#allocation5 + $0x30] sm:$0xf]
    %v90 = vld [vmem:[#allocation5 + $0x34] sm:$0xf]
    %v91 = vld [vmem:[#allocation5 + $0x38] sm:$0xf]
    %v92 = vld [vmem:[#allocation5 + $0x3c] sm:$0xf]
    %v93 = vld [vmem:[%s2] sm:$0x1]
    %v95 = vperm.slane %v93, 0
    %v99 = vunpack.c.l.b16 %v75
    %v100 = vunpack.c.l.b16 %v76
    %v101 = vpack.c.b16 %v100, %v99
    %v119 = vunpack.c.l.b16 %v77
    %v120 = vunpack.c.l.b16 %v78
    %v121 = vunpack.c.l.b16 %v79
    %v122 = vunpack.c.l.b16 %v80
    %v123 = vunpack.c.l.b16 %v81
    %v124 = vunpack.c.l.b16 %v82
    %v125 = vunpack.c.l.b16 %v83
    %v126 = vunpack.c.l.b16 %v84
    %v127 = vunpack.c.l.b16 %v85
    %v128 = vunpack.c.l.b16 %v86
    %v129 = vunpack.c.l.b16 %v87
    %v130 = vunpack.c.l.b16 %v88
    %v131 = vunpack.c.l.b16 %v89
    %v132 = vunpack.c.l.b16 %v90
    %v133 = vunpack.c.l.b16 %v91
    %v134 = vunpack.c.l.b16 %v92
    %v135 = vpack.c.b16 %v120, %v119
    %v136 = vpack.c.b16 %v122, %v121
    %v137 = vpack.c.b16 %v124, %v123
    %v138 = vpack.c.b16 %v126, %v125
    %v139 = vpack.c.b16 %v128, %v127
    %v140 = vpack.c.b16 %v130, %v129
    %v141 = vpack.c.b16 %v132, %v131
    %v142 = vpack.c.b16 %v134, %v133
    %151 = vmatpush.bf16.msra.mxu0 %v142
    %152 = vmatpush.bf16.msra.mxu0 %v141
    %153 = vmatpush.bf16.msra.mxu0 %v140
    %154 = vmatpush.bf16.msra.mxu0 %v139
    %155 = vmatpush.bf16.msra.mxu0 %v138
    %156 = vmatpush.bf16.msra.mxu0 %v137
    %157 = vmatpush.bf16.msra.mxu0 %v136
    %158 = vmatpush.bf16.msra.mxu0 %v135
    %159 = vmatmul.bf16.gmra.mxu0 %v101
    %v160 = vpop.f32.mrf.mxu0
    %v161 = vadd.f32 %v95, %v160
    %v162 = vpop.f32.mrf.mxu0
    %v163 = vadd.f32 %v95, %v162
    %164 = vdwg.mxu0
    %v165 = vmax.f32 %v161, 0.0
    %v166 = vmax.f32 %v163, 0.0
    %v167 = vld [vmem:[#allocation7] sm:$0xf]
    %v168 = vld [vmem:[#allocation7 + $0x4] sm:$0xf]
    %v169 = vld [vmem:[#allocation7 + $0x8] sm:$0xf]
    %v170 = vld [vmem:[#allocation7 + $0xc] sm:$0xf]
    %v171 = vld [vmem:[#allocation7 + $0x10] sm:$0xf]
    %v172 = vld [vmem:[#allocation7 + $0x14] sm:$0xf]
    %v173 = vld [vmem:[#allocation7 + $0x18] sm:$0xf]
    %v174 = vld [vmem:[#allocation7 + $0x1c] sm:$0xf]
    %v175 = vld [vmem:[#allocation7 + $0x20] sm:$0xf]
    %v176 = vld [vmem:[#allocation7 + $0x24] sm:$0xf]
    %v177 = vld [vmem:[#allocation7 + $0x28] sm:$0xf]
    %v178 = vld [vmem:[#allocation7 + $0x2c] sm:$0xf]
    %v179 = vld [vmem:[#allocation7 + $0x30] sm:$0xf]
    %v180 = vld [vmem:[#allocation7 + $0x34] sm:$0xf]
    %v181 = vld [vmem:[#allocation7 + $0x38] sm:$0xf]
    %v182 = vld [vmem:[#allocation7 + $0x3c] sm:$0xf]
    %v183 = vld [vmem:[%s4] sm:$0x1]
    %v184 = vpack.c.bf16 %v166, %v165
    %v186 = vperm.slane %v183, 0
    %v204 = vunpack.c.l.b16 %v167
    %v205 = vunpack.c.l.b16 %v168
    %v206 = vunpack.c.l.b16 %v169
    %v207 = vunpack.c.l.b16 %v170
    %v208 = vunpack.c.l.b16 %v171
    %v209 = vunpack.c.l.b16 %v172
    %v210 = vunpack.c.l.b16 %v173
    %v211 = vunpack.c.l.b16 %v174
    %v212 = vunpack.c.l.b16 %v175
    %v213 = vunpack.c.l.b16 %v176
    %v214 = vunpack.c.l.b16 %v177
    %v215 = vunpack.c.l.b16 %v178
    %v216 = vunpack.c.l.b16 %v179
    %v217 = vunpack.c.l.b16 %v180
    %v218 = vunpack.c.l.b16 %v181
    %v219 = vunpack.c.l.b16 %v182
    %v220 = vpack.c.b16 %v205, %v204
    %v221 = vpack.c.b16 %v207, %v206
    %v222 = vpack.c.b16 %v209, %v208
    %v223 = vpack.c.b16 %v211, %v210
    %v224 = vpack.c.b16 %v213, %v212
    %v225 = vpack.c.b16 %v215, %v214
    %v226 = vpack.c.b16 %v217, %v216
    %v227 = vpack.c.b16 %v219, %v218
    %236 = vmatpush.bf16.msra.mxu0 %v227
    %237 = vmatpush.bf16.msra.mxu0 %v226
    %238 = vmatpush.bf16.msra.mxu0 %v225
    %239 = vmatpush.bf16.msra.mxu0 %v224
    %240 = vmatpush.bf16.msra.mxu0 %v223
    %241 = vmatpush.bf16.msra.mxu0 %v222
    %242 = vmatpush.bf16.msra.mxu0 %v221
    %243 = vmatpush.bf16.msra.mxu0 %v220
    %244 = vmatmul.bf16.gmra.mxu0 %v184
    %v245 = vpop.f32.mrf.mxu0
    %v246 = vadd.f32 %v186, %v245
    %v247 = vpop.f32.mrf.mxu0
    %v248 = vadd.f32 %v186, %v247
    %249 = vdwg.mxu0
    %v250 = vmax.f32 %v246, 0.0
    %v251 = vmax.f32 %v248, 0.0
    %v252 = vld [vmem:[%s5] sm:$0x1]
    %v253 = vunpack.c.l.bf16 %v252
    %v254 = vld [vmem:[#allocation2] sm:$0x1]
    %v255 = vperm.slane %v253, 0
    %v256 = vmul.f32 %v250, %v255
    %v257 = vmul.f32 %v251, %v255
    %258 = vadd.xlane.f32.xlu0 %v256
    %v259 = vpop.xlane.xlu0 %258
    %260 = vadd.xlane.f32.xlu0 %v257
    %v261 = vpop.xlane.xlu0 %260
    %v263 = vperm.slane %v254, 0
    %v265 = vadd.f32 %v259, %v263
    %v266 = vadd.f32 %v261, %v263
    %vm267 = vcmask 7168
    %268 = vst.msk [vmem:[%s7] sm:$0xff] %vm267, %v265
    %269 = vst.msk [vmem:[%s7 + $0x8] sm:$0xff] %vm267, %v266
    // Predicated region
    $region42: #{tpu_custom_call.1} parent=1 // pred_check
      _
    $region43: #{tpu_custom_call.1} parent=1 // pred_check_branch
      %271 = sbr.rel (0) target = $region45
    $region44: #{tpu_custom_call.1} parent=1 // pred_region
      _
    $region45: #{tpu_custom_call.1} parent=1 // pred_fallthru
      _
    // Predicated region
    $region46: #{tpu_custom_call.1} parent=1 // pred_check
      _
    $region47: #{tpu_custom_call.1} parent=1 // pred_check_branch
      %273 = sbr.rel (0) target = $region49
    $region48: #{tpu_custom_call.1} parent=1 // pred_region
      _
    $region49: #{tpu_custom_call.1} parent=1 // pred_fallthru
      _
    %274 = vsyncpa [#allocation4], 1
    %275 = vsyncpa [#allocation6], 1

</llo_original>
